<compile_context>
chip_gen: v5e
topology: v5e:2x2
jax: 0.10.0
libtpu: 0.0.40
codegen_flags: <defaults>
</compile_context>

<pallas_src>
import functools

import jax
import jax.numpy as jnp
from jax.experimental import pallas as pl
from jax.experimental.pallas import tpu as pltpu

IGNORE_INDEX = 255


def _vmem_budget():
    """Returns (pipeline-buffer budget, vmem_limit_bytes) per TPU generation."""
    cap = 64 * 1024 * 1024                      # safe fallback (v7x-sized VMEM)
    try:
        cap = int(pltpu.get_tpu_info().vmem_capacity_bytes)
    except Exception:
        pass
    return cap // 4, cap // 2


# ---------------------------------------------------------------------------
# Dense path: HW % 128 == 0  ->  pixels occupy sublanes AND lanes.
# ---------------------------------------------------------------------------
def _ce2d_dense_kernel(x_ref, t_ref, sum_ref, cnt_ref, acc_sum, acc_cnt, *,
                       s_total, s_blk, blocks_per_split, need_mask):
    # x_ref: (1, C, S_blk, 128) logits; t_ref: (1, 1, S_blk, 128) labels.
    # sum_ref/cnt_ref: (1, 1, 1, 1) per-(image, split) outputs.
    # acc_sum/acc_cnt: (S_blk, 128) f32 accumulators (VMEM scratch).
    p = pl.program_id(2)
    n_p = pl.num_programs(2)

    @pl.when(p == 0)
    def _():
        acc_sum[...] = jnp.zeros_like(acc_sum)
        acc_cnt[...] = jnp.zeros_like(acc_cnt)

    x = x_ref[0].astype(jnp.float32)            # (C, S_blk, 128)
    t = t_ref[0][0].astype(jnp.int32)           # (S_blk, 128)

    # Class reduce over the leading axis = cheap elementwise ops across C slabs.
    m = jnp.max(x, axis=0)                                       # (S_blk, 128)
    sexp = jnp.sum(jnp.exp(x - m[jnp.newaxis]), axis=0)          # (S_blk, 128)
    lse = m + jnp.log(sexp)

    cls = jax.lax.broadcasted_iota(jnp.int32, x.shape, 0)
    gathered = jnp.sum(jnp.where(cls == t[jnp.newaxis], x, 0.0), axis=0)

    valid = t != IGNORE_INDEX
    if need_mask:                               # static: only for ragged tails
        split = pl.program_id(1)
        g_block = split * blocks_per_split + p
        row = jax.lax.broadcasted_iota(jnp.int32, t.shape, 0)
        valid = jnp.logical_and(valid, (g_block * s_blk + row) < s_total)

    acc_sum[...] += jnp.where(valid, lse - gathered, 0.0)
    acc_cnt[...] += valid.astype(jnp.float32)

    @pl.when(p == n_p - 1)
    def _():
        sum_ref[...] = jnp.sum(acc_sum[...]).reshape(1, 1, 1, 1)
        cnt_ref[...] = jnp.sum(acc_cnt[...]).reshape(1, 1, 1, 1)


def _pick_block_rows(s_total, c, x_dtype, t_dtype, budget_bytes):
    """Largest legal sublane-row count per block that fits the VMEM budget."""
    x_item = jnp.dtype(x_dtype).itemsize
    t_item = jnp.dtype(t_dtype).itemsize
    # Per row of 128 pixels: double-buffered logits + targets, in-kernel f32
    # upcast / exp / select temporaries (~3 x C x 4B), two f32 acc rows + slack.
    per_row = 128 * (2 * c * x_item + 2 * t_item + 3 * c * 4 + 3 * 4)
    cap = max(8, (budget_bytes // per_row) // 8 * 8)
    if s_total <= cap:
        return s_total                          # full dim (always legal)
    for s in range(cap, 7, -8):                 # prefer an even split (no mask)
        if s_total % s == 0:
            return s
    return cap


def _ce2d_dense(x, t, pixel_splits, max_block_rows):
    n, c, h, w = x.shape
    hw = h * w
    s_total = hw // 128
    x4 = x.reshape(n, c, s_total, 128)          # free views, no transpose/pad
    t4 = t.reshape(n, 1, s_total, 128)          # original (narrow) dtype

    budget, vmem_limit = _vmem_budget()
    s_blk = _pick_block_rows(s_total, c, x.dtype, t.dtype, budget)
    if max_block_rows is not None and max_block_rows < s_blk:
        s_blk = int(max_block_rows)
        if s_blk != s_total:
            s_blk = max(8, (s_blk // 8) * 8)

    total_blocks = pl.cdiv(s_total, s_blk)
    if pixel_splits is None:
        # Keep both v7x TensorCores busy when the batch axis cannot.
        pixel_splits = 2 if (n == 1 and total_blocks >= 2) else 1
    pixel_splits = max(1, min(int(pixel_splits), total_blocks))
    blocks_per_split = pl.cdiv(total_blocks, pixel_splits)
    covered_blocks = pixel_splits * blocks_per_split
    need_clamp = covered_blocks > total_blocks
    need_mask = covered_blocks * s_blk != s_total

    def block_index(s, p):
        g = s * blocks_per_split + p
        if need_clamp:                          # duplicated blocks are masked
            g = jnp.minimum(g, total_blocks - 1)
        return g

    kernel = functools.partial(
        _ce2d_dense_kernel, s_total=s_total, s_blk=s_blk,
        blocks_per_split=blocks_per_split, need_mask=need_mask)

    sums, cnts = pl.pallas_call(
        kernel,
        out_shape=(jax.ShapeDtypeStruct((n, pixel_splits, 1, 1), jnp.float32),
                   jax.ShapeDtypeStruct((n, pixel_splits, 1, 1), jnp.float32)),
        grid_spec=pltpu.PrefetchScalarGridSpec(
            num_scalar_prefetch=0,
            grid=(n, pixel_splits, blocks_per_split),
            in_specs=[
                pl.BlockSpec((1, c, s_blk, 128),
                             lambda ni, si, pi: (ni, 0, block_index(si, pi), 0)),
                pl.BlockSpec((1, 1, s_blk, 128),
                             lambda ni, si, pi: (ni, 0, block_index(si, pi), 0)),
            ],
            out_specs=(pl.BlockSpec((1, 1, 1, 1), lambda ni, si, pi: (ni, si, 0, 0)),
                       pl.BlockSpec((1, 1, 1, 1), lambda ni, si, pi: (ni, si, 0, 0))),
            scratch_shapes=[pltpu.VMEM((s_blk, 128), jnp.float32),
                            pltpu.VMEM((s_blk, 128), jnp.float32)]),
        compiler_params=pltpu.CompilerParams(
            dimension_semantics=("parallel", "parallel", "arbitrary"),
            vmem_limit_bytes=vmem_limit),
    )(x4, t4)
    return sums, cnts


# ---------------------------------------------------------------------------
# Flat fallback path: HW % 128 != 0  (pixels on lanes only).
# ---------------------------------------------------------------------------
def _ce2d_flat_kernel(x_ref, t_ref, sum_ref, cnt_ref, acc_sum, acc_cnt, *,
                      hw, need_mask):
    p = pl.program_id(1)
    n_p = pl.num_programs(1)

    @pl.when(p == 0)
    def _():
        acc_sum[...] = jnp.zeros_like(acc_sum)
        acc_cnt[...] = jnp.zeros_like(acc_cnt)

    x = x_ref[0].astype(jnp.float32)            # (C, TL)
    t = t_ref[0].astype(jnp.int32)              # (1, TL)

    m = jnp.max(x, axis=0, keepdims=True)
    sexp = jnp.sum(jnp.exp(x - m), axis=0, keepdims=True)
    lse = m + jnp.log(sexp)

    cls = jax.lax.broadcasted_iota(jnp.int32, x.shape, 0)
    gathered = jnp.sum(jnp.where(cls == t, x, 0.0), axis=0, keepdims=True)

    valid = t != IGNORE_INDEX
    if need_mask:                               # static: ragged tail only
        tl = t.shape[-1]
        lane = jax.lax.broadcasted_iota(jnp.int32, t.shape, 1)
        valid = jnp.logical_and(valid, (p * tl + lane) < hw)

    acc_sum[...] += jnp.where(valid, lse - gathered, 0.0)
    acc_cnt[...] += valid.astype(jnp.float32)

    @pl.when(p == n_p - 1)
    def _():
        sum_ref[...] = jnp.sum(acc_sum[...]).reshape(1, 1, 1)
        cnt_ref[...] = jnp.sum(acc_cnt[...]).reshape(1, 1, 1)


def _pick_tile_lanes(hw, c, x_dtype, t_dtype, budget_bytes):
    x_item = jnp.dtype(x_dtype).itemsize
    t_item = jnp.dtype(t_dtype).itemsize
    # (1, TL) rows pad to 8 sublanes in VMEM; account for that on the narrow
    # buffers plus the f32 upcast/exp temporaries of the (C, TL) tile.
    per_lane = 2 * c * x_item + 2 * 8 * t_item + 3 * c * 4 + 3 * 8 * 4
    cap = max(128, (budget_bytes // per_lane) // 128 * 128)
    if hw <= cap:
        return hw                               # single full-dim tile
    for tl in range(cap, 127, -128):            # prefer an even split (no mask)
        if hw % tl == 0:
            return tl
    return cap


def _ce2d_flat(x, t, max_tile_lanes):
    n, c, h, w = x.shape
    hw = h * w
    x3 = x.reshape(n, c, hw)
    t3 = t.reshape(n, 1, hw)                    # original (narrow) dtype

    budget, vmem_limit = _vmem_budget()
    tl = _pick_tile_lanes(hw, c, x.dtype, t.dtype, budget)
    if max_tile_lanes is not None and tl > max_tile_lanes and hw > max_tile_lanes:
        tl = max(128, (int(max_tile_lanes) // 128) * 128)
    num_p = pl.cdiv(hw, tl)
    need_mask = num_p * tl != hw

    kernel = functools.partial(_ce2d_flat_kernel, hw=hw, need_mask=need_mask)

    sums, cnts = pl.pallas_call(
        kernel,
        out_shape=(jax.ShapeDtypeStruct((n, 1, 1), jnp.float32),
                   jax.ShapeDtypeStruct((n, 1, 1), jnp.float32)),
        grid_spec=pltpu.PrefetchScalarGridSpec(
            num_scalar_prefetch=0,
            grid=(n, num_p),
            in_specs=[pl.BlockSpec((1, c, tl), lambda ni, pi: (ni, 0, pi)),
                      pl.BlockSpec((1, 1, tl), lambda ni, pi: (ni, 0, pi))],
            out_specs=(pl.BlockSpec((1, 1, 1), lambda ni, pi: (ni, 0, 0)),
                       pl.BlockSpec((1, 1, 1), lambda ni, pi: (ni, 0, 0))),
            scratch_shapes=[pltpu.VMEM((1, tl), jnp.float32),
                            pltpu.VMEM((1, tl), jnp.float32)]),
        compiler_params=pltpu.CompilerParams(
            dimension_semantics=("parallel", "arbitrary"),
            vmem_limit_bytes=vmem_limit),
    )(x3, t3)
    return sums, cnts


def cross_entropy_loss_2d(inputs, targets, *, pixel_splits=None,
                          max_block_rows=None, max_tile_lanes=None):
    """inputs: (N, C, H, W) float; targets: (N, H, W) int (255 ignored)."""
    _, _, h, w = inputs.shape
    if (h * w) % 128 == 0:
        sums, cnts = _ce2d_dense(inputs, targets, pixel_splits, max_block_rows)
    else:
        sums, cnts = _ce2d_flat(inputs, targets, max_tile_lanes)
    # size_average=True -> mean over non-ignored pixels (NaN if none, like torch).
    return jnp.sum(sums) / jnp.sum(cnts)


def _reference(inputs, targets):
    # pure-JAX reference mirroring nn.NLLLoss(ignore_index=255)(LogSoftmax(dim=1)(x), t)
    logp = jax.nn.log_softmax(inputs.astype(jnp.float32), axis=1)   # (N,C,H,W)
    t = targets.astype(jnp.int32)
    valid = t != IGNORE_INDEX
    t_safe = jnp.where(valid, t, 0)
    gathered = jnp.take_along_axis(logp, t_safe[:, None, :, :], axis=1)[:, 0]
    losses = jnp.where(valid, -gathered, 0.0)
    return jnp.sum(losses) / jnp.sum(valid.astype(jnp.float32))


if __name__ == "__main__":
    def make_case(key, n, c, h, w, tgt_dtype=jnp.int32, x_dtype=jnp.float32):
        k1, k2, k3 = jax.random.split(key, 3)
        x = jax.random.normal(k1, (n, c, h, w), dtype=jnp.float32).astype(x_dtype)
        t = jax.random.randint(k2, (n, h, w), 0, c, dtype=jnp.int32)
        ign = jax.random.bernoulli(k3, 0.1, (n, h, w))
        t = jnp.where(ign, IGNORE_INDEX, t).astype(tgt_dtype)
        return x, t

    keys = jax.random.split(jax.random.PRNGKey(0), 5)

    def check(x, t, **kw):
        out = jax.block_until_ready(cross_entropy_loss_2d(x, t, **kw))
        ref = jax.block_until_ready(_reference(x, t))
        assert jnp.allclose(out, ref, rtol=1e-4, atol=1e-4), (out, ref)

    # 1) Dense sublane+lane path: N=2, C=4, 16x16 (HW=256), int32 targets.
    x, t = make_case(keys[0], 2, 4, 16, 16)
    check(x, t)

    # 2) Dense path with forced small blocks + 2-way parallel pixel split
    #    (v7x megacore pattern), exercising clamp + tail mask: C=21, 48x48.
    x, t = make_case(keys[1], 1, 21, 48, 48)
    check(x, t, pixel_splits=2, max_block_rows=8)

    # 3) Dense path with narrow (uint8) segmentation-mask targets, N=1, 32x32.
    x, t = make_case(keys[2], 1, 3, 32, 32, tgt_dtype=jnp.uint8)
    check(x, t)

    # 4) Flat fallback path (HW % 128 != 0), single full tile: 9x9, C=5.
    x, t = make_case(keys[3], 1, 5, 9, 9)
    check(x, t)

    # 5) Flat fallback with ragged tail tiles and bf16 logits: 20x20, C=4.
    x, t = make_case(keys[4], 2, 4, 20, 20, x_dtype=jnp.bfloat16)
    check(x, t, max_tile_lanes=128)

    print("KERNEL_OK")
</pallas_src>

<mosaic_0001>
module attributes {stable_mosaic.version = 11 : i64} {
  func.func @_ce2d_dense_kernel(%arg0: i32, %arg1: i32, %arg2: i32, %arg3: memref<1x4x2x128xf32, #tpu.memory_space<vmem>>, %arg4: memref<1x1x2x128xi32, #tpu.memory_space<vmem>>, %arg5: memref<1x1x1x1xf32, #tpu.memory_space<vmem>>, %arg6: memref<1x1x1x1xf32, #tpu.memory_space<vmem>>, %arg7: memref<2x128xf32, #tpu.memory_space<vmem>>, %arg8: memref<2x128xf32, #tpu.memory_space<vmem>>) attributes {dimension_semantics = [#tpu.dimension_semantics<parallel>, #tpu.dimension_semantics<parallel>, #tpu.dimension_semantics<arbitrary>], iteration_bounds = array<i64: 2, 1, 1>, scalar_prefetch = 0 : i64, scratch_operands = 2 : i64, tpu.core_type = #tpu.core_type<tc>, window_params = [{transform_indices = @transform_0, window_bounds = array<i64: 1, 4, 2, 128>}, {transform_indices = @transform_1, window_bounds = array<i64: 1, 1, 2, 128>}, {transform_indices = @transform_2, window_bounds = array<i64: 1, 1, 1, 1>}, {transform_indices = @transform_3, window_bounds = array<i64: 1, 1, 1, 1>}]} {
    %c0_i32 = arith.constant 0 : i32
    %0 = arith.cmpi eq, %arg2, %c0_i32 : i32
    %1 = arith.extui %0 : i1 to i32
    %c0_i32_0 = arith.constant 0 : i32
    %2 = arith.cmpi ne, %1, %c0_i32_0 : i32
    scf.if %2 {
      %cst_22 = arith.constant 0.000000e+00 : f32
      %39 = vector.broadcast %cst_22 : f32 to vector<2x128xf32>
      %c0_23 = arith.constant 0 : index
      %c0_24 = arith.constant 0 : index
      %40 = vector.load %arg7[%c0_23, %c0_24] : memref<2x128xf32, #tpu.memory_space<vmem>>, vector<2x128xf32>
      tpu.vector_store %arg7[%c0_23, %c0_24], %39 {strides = array<i32>} : memref<2x128xf32, #tpu.memory_space<vmem>>, vector<2x128xf32>,
      %cst_25 = arith.constant 0.000000e+00 : f32
      %41 = vector.broadcast %cst_25 : f32 to vector<2x128xf32>
      %c0_26 = arith.constant 0 : index
      %c0_27 = arith.constant 0 : index
      %42 = vector.load %arg8[%c0_26, %c0_27] : memref<2x128xf32, #tpu.memory_space<vmem>>, vector<2x128xf32>
      tpu.vector_store %arg8[%c0_26, %c0_27], %41 {strides = array<i32>} : memref<2x128xf32, #tpu.memory_space<vmem>>, vector<2x128xf32>,
    } else {
    }
    %c0 = arith.constant 0 : index
    %c0_1 = arith.constant 0 : index
    %c0_2 = arith.constant 0 : index
    %c0_3 = arith.constant 0 : index
    %3 = vector.load %arg3[%c0, %c0_1, %c0_2, %c0_3] : memref<1x4x2x128xf32, #tpu.memory_space<vmem>>, vector<1x4x2x128xf32>
    %4 = vector.shape_cast %3 : vector<1x4x2x128xf32> to vector<4x2x128xf32>
    %c0_4 = arith.constant 0 : index
    %c0_5 = arith.constant 0 : index
    %c0_6 = arith.constant 0 : index
    %c0_7 = arith.constant 0 : index
    %5 = vector.load %arg4[%c0_4, %c0_5, %c0_6, %c0_7] : memref<1x1x2x128xi32, #tpu.memory_space<vmem>>, vector<1x1x2x128xi32>
    %6 = vector.shape_cast %5 : vector<1x1x2x128xi32> to vector<1x2x128xi32>
    %7 = vector.shape_cast %6 : vector<1x2x128xi32> to vector<2x128xi32>
    %cst = arith.constant dense<0xFF800000> : vector<2x128xf32>
    %8 = vector.multi_reduction <maximumf>, %4, %cst [0] : vector<4x2x128xf32> to vector<2x128xf32>
    %9 = vector.shape_cast %8 : vector<2x128xf32> to vector<1x2x128xf32>
    %10 = vector.broadcast %9 : vector<1x2x128xf32> to vector<4x2x128xf32>
    %11 = arith.subf %4, %10 : vector<4x2x128xf32>
    %12 = math.exp %11 : vector<4x2x128xf32>
    %cst_8 = arith.constant dense<0.000000e+00> : vector<2x128xf32>
    %13 = vector.multi_reduction <add>, %12, %cst_8 [0] : vector<4x2x128xf32> to vector<2x128xf32>
    %14 = math.log %13 : vector<2x128xf32>
    %15 = arith.addf %8, %14 : vector<2x128xf32>
    %16 = tpu.iota {dimensions = array<i32: 0>} : vector<4x2x128xi32>
    %17 = vector.shape_cast %7 : vector<2x128xi32> to vector<1x2x128xi32>
    %18 = vector.broadcast %17 : vector<1x2x128xi32> to vector<4x2x128xi32>
    %19 = arith.cmpi eq, %16, %18 : vector<4x2x128xi32>
    %cst_9 = arith.constant 0.000000e+00 : f32
    %20 = vector.broadcast %cst_9 : f32 to vector<4x2x128xf32>
    %21 = arith.select %19, %4, %20 : vector<4x2x128xi1>, vector<4x2x128xf32>
    %cst_10 = arith.constant dense<0.000000e+00> : vector<2x128xf32>
    %22 = vector.multi_reduction <add>, %21, %cst_10 [0] : vector<4x2x128xf32> to vector<2x128xf32>
    %c255_i32 = arith.constant 255 : i32
    %23 = vector.broadcast %c255_i32 : i32 to vector<2x128xi32>
    %24 = arith.cmpi ne, %7, %23 : vector<2x128xi32>
    %c0_11 = arith.constant 0 : index
    %c0_12 = arith.constant 0 : index
    %25 = vector.load %arg7[%c0_11, %c0_12] : memref<2x128xf32, #tpu.memory_space<vmem>>, vector<2x128xf32>
    %26 = arith.subf %15, %22 : vector<2x128xf32>
    %cst_13 = arith.constant 0.000000e+00 : f32
    %27 = vector.broadcast %cst_13 : f32 to vector<2x128xf32>
    %28 = arith.select %24, %26, %27 : vector<2x128xi1>, vector<2x128xf32>
    %29 = arith.addf %25, %28 : vector<2x128xf32>
    %c0_14 = arith.constant 0 : index
    %c0_15 = arith.constant 0 : index
    %30 = vector.load %arg7[%c0_14, %c0_15] : memref<2x128xf32, #tpu.memory_space<vmem>>, vector<2x128xf32>
    tpu.vector_store %arg7[%c0_14, %c0_15], %29 {strides = array<i32>} : memref<2x128xf32, #tpu.memory_space<vmem>>, vector<2x128xf32>,
    %c0_16 = arith.constant 0 : index
    %c0_17 = arith.constant 0 : index
    %31 = vector.load %arg8[%c0_16, %c0_17] : memref<2x128xf32, #tpu.memory_space<vmem>>, vector<2x128xf32>
    %32 = arith.extui %24 : vector<2x128xi1> to vector<2x128xi32>
    %33 = arith.sitofp %32 : vector<2x128xi32> to vector<2x128xf32>
    %34 = arith.addf %31, %33 : vector<2x128xf32>
    %c0_18 = arith.constant 0 : index
    %c0_19 = arith.constant 0 : index
    %35 = vector.load %arg8[%c0_18, %c0_19] : memref<2x128xf32, #tpu.memory_space<vmem>>, vector<2x128xf32>
    tpu.vector_store %arg8[%c0_18, %c0_19], %34 {strides = array<i32>} : memref<2x128xf32, #tpu.memory_space<vmem>>, vector<2x128xf32>,
    %c0_i32_20 = arith.constant 0 : i32
    %36 = arith.cmpi eq, %arg2, %c0_i32_20 : i32
    %37 = arith.extui %36 : i1 to i32
    %c0_i32_21 = arith.constant 0 : i32
    %38 = arith.cmpi ne, %37, %c0_i32_21 : i32
    scf.if %38 {
      %c0_22 = arith.constant 0 : index
      %c0_23 = arith.constant 0 : index
      %39 = vector.load %arg7[%c0_22, %c0_23] : memref<2x128xf32, #tpu.memory_space<vmem>>, vector<2x128xf32>
      %40 = vector.shape_cast %39 : vector<2x128xf32> to vector<1x2x128xf32>
      %cst_24 = arith.constant dense<0.000000e+00> : vector<1xf32>
      %41 = vector.multi_reduction <add>, %40, %cst_24 [1, 2] : vector<1x2x128xf32> to vector<1xf32>
      %42 = vector.shape_cast %41 : vector<1xf32> to vector<1x1x1xf32>
      %43 = vector.extract %42[0, 0, 0] : f32 from vector<1x1x1xf32>
      %44 = vector.broadcast %43 : f32 to vector<1x1x1x1xf32>
      %c0_25 = arith.constant 0 : index
      %c0_26 = arith.constant 0 : index
      %c0_27 = arith.constant 0 : index
      %c0_28 = arith.constant 0 : index
      %45 = vector.load %arg5[%c0_25, %c0_26, %c0_27, %c0_28] : memref<1x1x1x1xf32, #tpu.memory_space<vmem>>, vector<1x1x1x1xf32>
      tpu.vector_store %arg5[%c0_25, %c0_26, %c0_27, %c0_28], %44 {strides = array<i32>} : memref<1x1x1x1xf32, #tpu.memory_space<vmem>>, vector<1x1x1x1xf32>,
      %c0_29 = arith.constant 0 : index
      %c0_30 = arith.constant 0 : index
      %46 = vector.load %arg8[%c0_29, %c0_30] : memref<2x128xf32, #tpu.memory_space<vmem>>, vector<2x128xf32>
      %47 = vector.shape_cast %46 : vector<2x128xf32> to vector<1x2x128xf32>
      %cst_31 = arith.constant dense<0.000000e+00> : vector<1xf32>
      %48 = vector.multi_reduction <add>, %47, %cst_31 [1, 2] : vector<1x2x128xf32> to vector<1xf32>
      %49 = vector.shape_cast %48 : vector<1xf32> to vector<1x1x1xf32>
      %50 = vector.extract %49[0, 0, 0] : f32 from vector<1x1x1xf32>
      %51 = vector.broadcast %50 : f32 to vector<1x1x1x1xf32>
      %c0_32 = arith.constant 0 : index
      %c0_33 = arith.constant 0 : index
      %c0_34 = arith.constant 0 : index
      %c0_35 = arith.constant 0 : index
      %52 = vector.load %arg6[%c0_32, %c0_33, %c0_34, %c0_35] : memref<1x1x1x1xf32, #tpu.memory_space<vmem>>, vector<1x1x1x1xf32>
      tpu.vector_store %arg6[%c0_32, %c0_33, %c0_34, %c0_35], %51 {strides = array<i32>} : memref<1x1x1x1xf32, #tpu.memory_space<vmem>>, vector<1x1x1x1xf32>,
    } else {
    }
    return
  }
  func.func @transform_0(%arg0: i32, %arg1: i32, %arg2: i32) -> (i32, i32, i32, i32) {
    %c1_i32 = arith.constant 1 : i32
    %0 = arith.muli %arg1, %c1_i32 : i32
    %1 = arith.addi %0, %arg2 : i32
    %c0_i32 = arith.constant 0 : i32
    %c0_i32_0 = arith.constant 0 : i32
    %c0_i32_1 = arith.constant 0 : i32
    return %arg0, %c0_i32, %1, %c0_i32_0 : i32, i32, i32, i32
  }
  func.func @transform_1(%arg0: i32, %arg1: i32, %arg2: i32) -> (i32, i32, i32, i32) {
    %c1_i32 = arith.constant 1 : i32
    %0 = arith.muli %arg1, %c1_i32 : i32
    %1 = arith.addi %0, %arg2 : i32
    %c0_i32 = arith.constant 0 : i32
    %c0_i32_0 = arith.constant 0 : i32
    %c0_i32_1 = arith.constant 0 : i32
    return %arg0, %c0_i32, %1, %c0_i32_0 : i32, i32, i32, i32
  }
  func.func @transform_2(%arg0: i32, %arg1: i32, %arg2: i32) -> (i32, i32, i32, i32) {
    %c0_i32 = arith.constant 0 : i32
    %c0_i32_0 = arith.constant 0 : i32
    %c0_i32_1 = arith.constant 0 : i32
    return %arg0, %arg1, %c0_i32, %c0_i32_0 : i32, i32, i32, i32
  }
  func.func @transform_3(%arg0: i32, %arg1: i32, %arg2: i32) -> (i32, i32, i32, i32) {
    %c0_i32 = arith.constant 0 : i32
    %c0_i32_0 = arith.constant 0 : i32
    %c0_i32_1 = arith.constant 0 : i32
    return %arg0, %arg1, %c0_i32, %c0_i32_0 : i32, i32, i32, i32
  }
}

</mosaic_0001>

<llo_original>
// kernel: tpu_custom_call.1
$region0: #{tpu_custom_call.1}
  #allocation0 [shape = 'u32[]', space=smem, size = 0x4, offset = 0x4, fixed_abs, tag = 'smem constant byte address 0x4 - core index']
  #allocation1 [shape = 'u32[72,128]{1,0:T(1,128)}', space=vmem, size = 0x9000, scoped, tag = 'internal scratch']
  #allocation2 [shape = 'f32[2,128]{1,0:T(2,128)}', space=vmem, size = 0x400, scoped, tag = 'scratch operand']
  #allocation3 [shape = 'f32[2,128]{1,0:T(2,128)}', space=vmem, size = 0x400, scoped, tag = 'scratch operand']
  %s0 = inlined_call_operand.hbm [shape: f32[2,4,2,128], index: 0, kind: input, shape index: {}]
  %s1 = inlined_call_operand.hbm [shape: s32[2,1,2,128], index: 1, kind: input, shape index: {}]
  %s2 = inlined_call_operand.vmem [shape: f32[2,1,1,1], index: 2, kind: output, shape index: {0}]
  %s3 = inlined_call_operand.vmem [shape: f32[2,1,1,1], index: 3, kind: output, shape index: {1}]
  %4 = xla_tuple %s2, %s3
  %s5 = sld [smem:[#allocation0]]
  $region65: #{tpu_custom_call.1} parent=0
    _
  %s7 = ssub.s32 1, %s5
  %s8 = scalar_select 0, %s7, %s5
  $region1: #{tpu_custom_call.1} parent=0
    #allocation4 [shape = 'u8[8192]{0}', space=vmem, size = 0x2000, scoped, tag = 'input window, operand 0']
    #allocation5 [shape = 's32[2]{0}', space=sflag, size = 0x8, scoped, tag = 'scoped memory for tpu_custom_call.1']
    #allocation6 [shape = 'u8[2048]{0}', space=vmem, size = 0x800, scoped, tag = 'input window, operand 1']
    #allocation7 [shape = 's32[2]{0}', space=sflag, size = 0x8, scoped, tag = 'scoped memory for tpu_custom_call.1']
    %9 = vsyncpa [#allocation5], 0
    %s10 = scalar_lea.sflag [#allocation5], 1
    %11 = vsyncpa %s10, 0
    %12 = vsyncpa [#allocation7], 0
    %s13 = scalar_lea.sflag [#allocation7], 1
    %14 = vsyncpa %s13, 0
    loop: start=0, step=1, limit=4
    $region2: #{tpu_custom_call.1} parent=1 // loop_pre_header
      _
    $region3: #{tpu_custom_call.1} parent=1 // loop_header
      %s16 = sphi 0, %s20
      %p17 = scmp.ge.s32.totalorder %s16, 4
      %s23 = sphi 0, %s42
      %s24 = sphi 0, %s38
      %s25 = sphi 0, %s34
      %s26 = sphi 0, %s23
      %s27 = sphi 0, %s24
      %s28 = sphi 0, %s25
      %s29 = sphi 0, %s26
      %s30 = sphi 0, %s27
      %s31 = sphi 0, %s28
      %s49 = sphi 0, %s51
      %s52 = sphi 0, %s49
      %s53 = sphi 0, %s52
      %s69 = sphi 0, %s53
      %s79 = sphi 0, %s81
      %s82 = sphi 0, %s79
      %s83 = sphi 0, %s82
      %s99 = sphi 0, %s83
      %s107 = sphi 0, %s109
      %s110 = sphi 0, %s107
      %s111 = sphi 0, %s110
      %s127 = sphi 0, %s111
      %s135 = sphi 0, %s137
      %s138 = sphi 0, %s135
      %s139 = sphi 0, %s138
      %s155 = sphi 0, %s139
    $region4: #{tpu_custom_call.1} parent=1 // loop_header_branch
      %19 = sbr.rel (%p17) target = $region8
    $region5: #{tpu_custom_call.1} parent=1 // loop_body
      %s21 = ssub.s32 %s16, 1
      %s22 = ssub.s32 %s16, 2
      %s32 = sadd.s32 1, %s25
      %p33 = scmp.ge.s32.totalorder %s32, 1
      %s34 = scalar_select %p33, 0, %s32
      %s35 = sadd.s32 1, %s24
      %s36 = scalar_select %p33, %s35, %s24
      %p37 = scmp.ge.s32.totalorder %s36, 1
      %s38 = scalar_select %p37, 0, %s36
      %s39 = sadd.s32 1, %s23
      %s40 = scalar_select %p37, %s39, %s23
      %p41 = scmp.ge.s32.totalorder %s40, 2
      %s42 = scalar_select %p41, 0, %s40
      %s43 = sadd.s32 %s24, %s25
      %s44 = sadd.s32 %s38, %s34
      %s45 = ssub.s32 %s23, %s42
      %s46 = ssub.s32 %s43, %s44
      %s47 = sor.u32 %s45, %s46
      %p48 = scmp.eq.s32.totalorder %s47, 0
      %s50 = sadd.s32 %s49, 1
      %s51 = scalar_select %p48, %s49, %s50
      %p54 = pneg %p48
      %p55 = scmp.eq.s32.totalorder %s16, 1
      %p56 = por %p54, %p55
      %p57 = scmp.ne.s32.totalorder %s49, %s52
      %p58 = scmp.eq.s32.totalorder %s16, 0
      %p59 = por %p57, %p58
      %p60 = scmp.ne.s32.totalorder %s49, %s52
      %p61 = scmp.eq.s32.totalorder %s21, 1
      %p62 = por %p60, %p61
      %p63 = scmp.ne.s32.totalorder %s52, %s53
      %p64 = scmp.eq.s32.totalorder %s21, 0
      %p65 = por %p63, %p64
      %p66 = scmp.ne.s32.totalorder %s52, %s53
      %p67 = scmp.eq.s32.totalorder %s22, 1
      %p68 = por %p66, %p67
      %p70 = scmp.ne.s32.totalorder %s53, %s69
      %p71 = scmp.eq.s32.totalorder %s22, 0
      %p72 = por %p70, %p71
      %s73 = sadd.s32 %s24, %s25
      %s74 = sadd.s32 %s38, %s34
      %s75 = ssub.s32 %s23, %s42
      %s76 = ssub.s32 %s73, %s74
      %s77 = sor.u32 %s75, %s76
      %p78 = scmp.eq.s32.totalorder %s77, 0
      %s80 = sadd.s32 %s79, 1
      %s81 = scalar_select %p78, %s79, %s80
      %p84 = pneg %p78
      %p85 = scmp.eq.s32.totalorder %s16, 1
      %p86 = por %p84, %p85
      %p87 = scmp.ne.s32.totalorder %s79, %s82
      %p88 = scmp.eq.s32.totalorder %s16, 0
      %p89 = por %p87, %p88
      %p90 = scmp.ne.s32.totalorder %s79, %s82
      %p91 = scmp.eq.s32.totalorder %s21, 1
      %p92 = por %p90, %p91
      %p93 = scmp.ne.s32.totalorder %s82, %s83
      %p94 = scmp.eq.s32.totalorder %s21, 0
      %p95 = por %p93, %p94
      %p96 = scmp.ne.s32.totalorder %s82, %s83
      %p97 = scmp.eq.s32.totalorder %s22, 1
      %p98 = por %p96, %p97
      %p100 = scmp.ne.s32.totalorder %s83, %s99
      %p101 = scmp.eq.s32.totalorder %s22, 0
      %p102 = por %p100, %p101
      %s103 = ssub.s32 %s23, %s42
      %s104 = ssub.s32 %s24, %s38
      %s105 = sor.u32 %s103, %s104
      %p106 = scmp.eq.s32.totalorder %s105, 0
      %s108 = sadd.s32 %s107, 1
      %s109 = scalar_select %p106, %s107, %s108
      %p112 = pneg %p106
      %p113 = scmp.eq.s32.totalorder %s16, 1
      %p114 = por %p112, %p113
      %p115 = scmp.ne.s32.totalorder %s107, %s110
      %p116 = scmp.eq.s32.totalorder %s16, 0
      %p117 = por %p115, %p116
      %p118 = scmp.ne.s32.totalorder %s107, %s110
      %p119 = scmp.eq.s32.totalorder %s21, 1
      %p120 = por %p118, %p119
      %p121 = scmp.ne.s32.totalorder %s110, %s111
      %p122 = scmp.eq.s32.totalorder %s21, 0
      %p123 = por %p121, %p122
      %p124 = scmp.ne.s32.totalorder %s110, %s111
      %p125 = scmp.eq.s32.totalorder %s22, 1
      %p126 = por %p124, %p125
      %p128 = scmp.ne.s32.totalorder %s111, %s127
      %p129 = scmp.eq.s32.totalorder %s22, 0
      %p130 = por %p128, %p129
      %s131 = ssub.s32 %s23, %s42
      %s132 = ssub.s32 %s24, %s38
      %s133 = sor.u32 %s131, %s132
      %p134 = scmp.eq.s32.totalorder %s133, 0
      %s136 = sadd.s32 %s135, 1
      %s137 = scalar_select %p134, %s135, %s136
      %p140 = pneg %p134
      %p141 = scmp.eq.s32.totalorder %s16, 1
      %p142 = por %p140, %p141
      %p143 = scmp.ne.s32.totalorder %s135, %s138
      %p144 = scmp.eq.s32.totalorder %s16, 0
      %p145 = por %p143, %p144
      %p146 = scmp.ne.s32.totalorder %s135, %s138
      %p147 = scmp.eq.s32.totalorder %s21, 1
      %p148 = por %p146, %p147
      %p149 = scmp.ne.s32.totalorder %s138, %s139
      %p150 = scmp.eq.s32.totalorder %s21, 0
      %p151 = por %p149, %p150
      %p152 = scmp.ne.s32.totalorder %s138, %s139
      %p153 = scmp.eq.s32.totalorder %s22, 1
      %p154 = por %p152, %p153
      %p156 = scmp.ne.s32.totalorder %s139, %s155
      %p157 = scmp.eq.s32.totalorder %s22, 0
      %p158 = por %p156, %p157
      %p159 = scmp.le.s32.totalorder 1, %s16
      %p160 = scmp.lt.s32.totalorder %s16, 3
      %p161 = pnand %p159, %p160
      %p162 = pneg %p161
      // Predicated region
      $region9: #{tpu_custom_call.1} parent=5 // pred_check
        _
      $region10: #{tpu_custom_call.1} parent=5 // pred_check_branch
        %164 = sbr.rel (%p161) target = $region12
      $region11: #{tpu_custom_call.1} parent=5 // pred_region
        %s165 = ssub.s32 %s16, 1
      $region12: #{tpu_custom_call.1} parent=5 // pred_fallthru
        _
      %p166 = scmp.lt.s32.totalorder %s16, 2
      // Predicated region
      $region13: #{tpu_custom_call.1} parent=5 // pred_check
        %p167 = pneg %p166
      $region14: #{tpu_custom_call.1} parent=5 // pred_check_branch
        %169 = sbr.rel (%p167) target = $region16
      $region15: #{tpu_custom_call.1} parent=5 // pred_region
        // Predicated region
        $region17: #{tpu_custom_call.1} parent=15 // pred_check
          %p170 = pneg %p59
        $region18: #{tpu_custom_call.1} parent=15 // pred_check_branch
          %172 = sbr.rel (%p170) target = $region20
        $region19: #{tpu_custom_call.1} parent=15 // pred_region
          %s173 = sand.u32 %s49, 1
          %s174 = scalar_lea.sflag [#allocation5], %s173
          %s175 = sand.u32 %s49, 1
          %s176 = smul.addr %s175, 8
          %s177 = scalar_lea.vmem [#allocation4], %s176
          %s178 = sadd.s32 %s24, %s25
          %180 = vsyncadd %s174, 0
          %s181 = smul.addr %s23, 4
          %s182 = sadd.s32 %s178, %s181
          %s183 = smul.addr %s182, 2
          %s184 = scalar_lea.hbm %s0, %s183
          %s185 = sshll.u32 %s184, 4
          %s186 = int_to_ptr.hbm [resolvable:$true] %s185
          %s187 = sshll.u32 %s177, 4
          %s188 = int_to_ptr.vmem [resolvable:$true] %s187
          %193 = dma.hbm_to_vmem [thread:$0]  %s186, 128, %s188, %s174, 32, 32, 2
        $region20: #{tpu_custom_call.1} parent=15 // pred_fallthru
          _
        // Predicated region
        $region21: #{tpu_custom_call.1} parent=15 // pred_check
          %p194 = pneg %p89
        $region22: #{tpu_custom_call.1} parent=15 // pred_check_branch
          %196 = sbr.rel (%p194) target = $region24
        $region23: #{tpu_custom_call.1} parent=15 // pred_region
          %s197 = sand.u32 %s79, 1
          %s198 = scalar_lea.sflag [#allocation7], %s197
          %s199 = sand.u32 %s79, 1
          %s200 = smul.addr %s199, 2
          %s201 = scalar_lea.vmem [#allocation6], %s200
          %s202 = sadd.s32 %s24, %s25
          %204 = vsyncadd %s198, 0
          %s205 = sadd.s32 %s202, %s23
          %s206 = smul.addr %s205, 2
          %s207 = scalar_lea.hbm %s1, %s206
          %s209 = sshll.u32 %s207, 4
          %s210 = int_to_ptr.hbm [resolvable:$true] %s209
          %s211 = sshll.u32 %s201, 4
          %s212 = int_to_ptr.vmem [resolvable:$true] %s211
          %214 = dma.hbm_to_vmem [thread:$0]  %s210, 32, %s212, %s198
        $region24: #{tpu_custom_call.1} parent=15 // pred_fallthru
          _
      $region16: #{tpu_custom_call.1} parent=5 // pred_fallthru
        _
      %p215 = scmp.le.s32.totalorder 1, %s16
      %p216 = scmp.lt.s32.totalorder %s16, 3
      %p217 = pnand %p215, %p216
      %p218 = pneg %p217
      // Predicated region
      $region25: #{tpu_custom_call.1} parent=5 // pred_check
        _
      $region26: #{tpu_custom_call.1} parent=5 // pred_check_branch
        %220 = sbr.rel (%p217) target = $region28
      $region27: #{tpu_custom_call.1} parent=5 // pred_region
        %s221 = ssub.s32 %s16, 1
        %s222 = sand.u32 %s52, 1
        %s223 = scalar_lea.sflag [#allocation5], %s222
        %s224 = sand.u32 %s52, 1
        %s225 = smul.addr %s224, 8
        %s226 = scalar_lea.vmem [#allocation4], %s225
        // Predicated region
        $region29: #{tpu_custom_call.1} parent=27 // pred_check
          %p227 = pneg %p65
        $region30: #{tpu_custom_call.1} parent=27 // pred_check_branch
          %229 = sbr.rel (%p227) target = $region32
        $region31: #{tpu_custom_call.1} parent=27 // pred_region
          %231 = dma.done %s223, 128
        $region32: #{tpu_custom_call.1} parent=27 // pred_fallthru
          _
        %s232 = sand.u32 %s82, 1
        %s233 = scalar_lea.sflag [#allocation7], %s232
        %s234 = sand.u32 %s82, 1
        %s235 = smul.addr %s234, 2
        %s236 = scalar_lea.vmem [#allocation6], %s235
        // Predicated region
        $region33: #{tpu_custom_call.1} parent=27 // pred_check
          %p237 = pneg %p95
        $region34: #{tpu_custom_call.1} parent=27 // pred_check_branch
          %239 = sbr.rel (%p237) target = $region36
        $region35: #{tpu_custom_call.1} parent=27 // pred_region
          %241 = dma.done %s233, 32
        $region36: #{tpu_custom_call.1} parent=27 // pred_fallthru
          _
        %s242 = sand.u32 %s52, 1
        %s243 = scalar_lea.sflag [#allocation5], %s242
        %s244 = sand.u32 %s52, 1
        %s245 = smul.addr %s244, 8
        %s246 = scalar_lea.vmem [#allocation4], %s245
        %p247 = pneg %p65
        %p248 = pneg %p62
        %s249 = sand.u32 %s82, 1
        %s250 = scalar_lea.sflag [#allocation7], %s249
        %s251 = sand.u32 %s82, 1
        %s252 = smul.addr %s251, 2
        %s253 = scalar_lea.vmem [#allocation6], %s252
        %p254 = pneg %p95
        %p255 = pneg %p92
        %p256 = pneg %p123
        %p257 = pneg %p120
        %p258 = scmp.lt.s32.totalorder %s26, 1
        %s259 = scalar_select %p258, %s26, 1
        %p260 = scmp.lt.s32.totalorder %s27, 0
        %s261 = scalar_select %p260, %s27, 0
        %s262 = sadd.s32 %s261, %s259
        %s263 = scalar_lea.vmem %s2, %s262
        %p264 = pneg %p151
        %p265 = pneg %p148
        %p266 = scmp.lt.s32.totalorder %s26, 1
        %s267 = scalar_select %p266, %s26, 1
        %p268 = scmp.lt.s32.totalorder %s27, 0
        %s269 = scalar_select %p268, %s27, 0
        %s270 = sadd.s32 %s269, %s267
        %s271 = scalar_lea.vmem %s3, %s270
        %s272 = sadd.s32 %s27, %s28
        %s273 = sadd.s32 %s27, %s28
        %p274 = scmp.lt.s32.totalorder %s26, 1
        %s275 = scalar_select %p274, %s26, 1
        %p276 = scmp.lt.s32.totalorder %s27, 0
        %s277 = scalar_select %p276, %s27, 0
        %s278 = sadd.s32 %s277, %s275
        %s279 = scalar_lea.vmem %s2, %s278
        %p280 = scmp.lt.s32.totalorder %s26, 1
        %s281 = scalar_select %p280, %s26, 1
        %p282 = scmp.lt.s32.totalorder %s27, 0
        %s283 = scalar_select %p282, %s27, 0
        %s284 = sadd.s32 %s283, %s281
        %s285 = scalar_lea.vmem %s3, %s284
        %p286 = scmp.eq.s32.totalorder %s28, 0
        // Predicated region
        $region37: #{tpu_custom_call.1} parent=27 // pred_check
          %p287 = pneg %p286
        $region38: #{tpu_custom_call.1} parent=27 // pred_check_branch
          %289 = sbr.rel (%p287) target = $region40
        $region39: #{tpu_custom_call.1} parent=27 // pred_region
          %290 = vst [vmem:[#allocation2] sm:$0x3] 0.0
          %291 = vst [vmem:[#allocation3] sm:$0x3] 0.0
        $region40: #{tpu_custom_call.1} parent=27 // pred_fallthru
          _
        %v292 = vld [vmem:[%s226] sm:$0x3]
        %v293 = vld [vmem:[%s226 + $0x2] sm:$0x3]
        %v294 = vld [vmem:[%s226 + $0x4] sm:$0x3]
        %v295 = vld [vmem:[%s226 + $0x6] sm:$0x3]
        %v296 = vld [vmem:[%s236] sm:$0x3]
        %vm297 = vcmask 1041408
        %v298 = vsel %vm297, %v292, -inf
        %v299 = vsel %vm297, %v293, -inf
        %v300 = vsel %vm297, %v294, -inf
        %v301 = vsel %vm297, %v295, -inf
        %v302 = vmax.f32 %v298, %v299
        %v303 = vmax.f32 %v300, %v301
        %v304 = vmax.f32 %v302, %v303
        %v305 = vsub.f32 %v292, %v304
        %v306 = vsub.f32 %v293, %v304
        %v307 = vsub.f32 %v294, %v304
        %v308 = vsub.f32 %v295, %v304
        %v309 = vmul.f32 %v305, 1.442695
        %v310 = vpow.pop %v309
        %v311 = vmul.f32 %v306, 1.442695
        %v312 = vpow.pop %v311
        %v313 = vmul.f32 %v307, 1.442695
        %v314 = vpow.pop %v313
        %v315 = vmul.f32 %v308, 1.442695
        %v316 = vpow.pop %v315
        %v317 = vsel %vm297, %v310, 0.0
        %v318 = vsel %vm297, %v312, 0.0
        %v319 = vadd.f32 %v317, %v318
        %v320 = vsel %vm297, %v314, 0.0
        %v321 = vadd.f32 %v319, %v320
        %v322 = vsel %vm297, %v316, 0.0
        %v323 = vadd.f32 %v321, %v322
        %v324 = vlog2.pop %v323
        %v325 = vmul.f32 %v324, 0.6931472
        %v326 = vadd.f32 %v304, %v325
        %vm327 = vcmp.eq.s32.totalorder %v296, 0
        %vm328 = vcmp.eq.s32.totalorder %v296, 1
        %vm329 = vcmp.eq.s32.totalorder %v296, 2
        %vm330 = vcmp.eq.s32.totalorder %v296, 3
        %v331 = vsel %vm327, %v292, 0.0
        %v332 = vsel %vm328, %v293, 0.0
        %v333 = vsel %vm329, %v294, 0.0
        %v334 = vsel %vm330, %v295, 0.0
        %v335 = vsel %vm297, %v331, 0.0
        %v336 = vsel %vm297, %v332, 0.0
        %v337 = vadd.f32 %v335, %v336
        %v338 = vsel %vm297, %v333, 0.0
        %v339 = vadd.f32 %v337, %v338
        %v340 = vsel %vm297, %v334, 0.0
        %v341 = vadd.f32 %v339, %v340
        %vm342 = vcmp.ne.s32.totalorder %v296, 255
        %v343 = vld [vmem:[#allocation2] sm:$0x3]
        %v344 = vsub.f32 %v326, %v341
        %v345 = vsel %vm342, %v344, 0.0
        %v346 = vadd.f32 %v343, %v345
        %347 = vst [vmem:[#allocation2] sm:$0x3] %v346
        %v348 = vld [vmem:[#allocation3] sm:$0x3]
        %v349 = vsel %vm342, 1, 0
        %v350 = vcvt.s32.f32 %v349
        %v351 = vadd.f32 %v348, %v350
        %352 = vst [vmem:[#allocation3] sm:$0x3] %v351
        // Predicated region
        $region41: #{tpu_custom_call.1} parent=27 // pred_check
          %p353 = pneg %p286
        $region42: #{tpu_custom_call.1} parent=27 // pred_check_branch
          %355 = sbr.rel (%p353) target = $region44
        $region43: #{tpu_custom_call.1} parent=27 // pred_region
          %v356 = vld [vmem:[#allocation2] sm:$0x3]
          %v357 = vsel %vm297, %v356, 0.0
          %358 = vadd.xlane.f32.xlu0 %v357
          %v359 = vpop.xlane.xlu0 %358
          %v360 = vrot.slane %v359, 4
          %v361 = vadd.f32 %v359, %v360
          %v362 = vrot.slane %v361, 2
          %v363 = vadd.f32 %v361, %v362
          %v364 = vrot.slane %v363, 1
          %v365 = vadd.f32 %v363, %v364
          %s366 = vtos %v365
          %v367 = vstv %s366
          %vm368 = vcmask 0
          %369 = vst.msk [vmem:[%s279] sm:$0x1] %vm368, %v367
          %v370 = vld [vmem:[#allocation3] sm:$0x3]
          %v371 = vsel %vm297, %v370, 0.0
          %372 = vadd.xlane.f32.xlu0 %v371
          %v373 = vpop.xlane.xlu0 %372
          %v374 = vrot.slane %v373, 4
          %v375 = vadd.f32 %v373, %v374
          %v376 = vrot.slane %v375, 2
          %v377 = vadd.f32 %v375, %v376
          %v378 = vrot.slane %v377, 1
          %v379 = vadd.f32 %v377, %v378
          %s380 = vtos %v379
          %v381 = vstv %s380
          %382 = vst.msk [vmem:[%s285] sm:$0x1] %vm368, %v381
        $region44: #{tpu_custom_call.1} parent=27 // pred_fallthru
          _
        %p383 = scmp.lt.s32.totalorder %s26, 1
        %s384 = scalar_select %p383, %s26, 1
        %p385 = scmp.lt.s32.totalorder %s27, 0
        %s386 = scalar_select %p385, %s27, 0
        %s387 = sadd.s32 %s386, %s384
        %s388 = scalar_lea.vmem %s2, %s387
        %p389 = scmp.lt.s32.totalorder %s26, 1
        %s390 = scalar_select %p389, %s26, 1
        %p391 = scmp.lt.s32.totalorder %s27, 0
        %s392 = scalar_select %p391, %s27, 0
        %s393 = sadd.s32 %s392, %s390
        %s394 = scalar_lea.vmem %s3, %s393
        // Predicated region
        $region45: #{tpu_custom_call.1} parent=27 // pred_check
          %p395 = pneg %p120
        $region46: #{tpu_custom_call.1} parent=27 // pred_check_branch
          %397 = sbr.rel (%p395) target = $region48
        $region47: #{tpu_custom_call.1} parent=27 // pred_region
          _
        $region48: #{tpu_custom_call.1} parent=27 // pred_fallthru
          _
        // Predicated region
        $region49: #{tpu_custom_call.1} parent=27 // pred_check
          %p398 = pneg %p148
        $region50: #{tpu_custom_call.1} parent=27 // pred_check_branch
          %400 = sbr.rel (%p398) target = $region52
        $region51: #{tpu_custom_call.1} parent=27 // pred_region
          _
        $region52: #{tpu_custom_call.1} parent=27 // pred_fallthru
          _
      $region28: #{tpu_custom_call.1} parent=5 // pred_fallthru
        _
      %p401 = scmp.le.s32.totalorder 2, %s16
      // Predicated region
      $region53: #{tpu_custom_call.1} parent=5 // pred_check
        %p402 = pneg %p401
      $region54: #{tpu_custom_call.1} parent=5 // pred_check_branch
        %404 = sbr.rel (%p402) target = $region56
      $region55: #{tpu_custom_call.1} parent=5 // pred_region
        %s405 = ssub.s32 %s16, 2
        // Predicated region
        $region57: #{tpu_custom_call.1} parent=55 // pred_check
          %p406 = pneg %p126
        $region58: #{tpu_custom_call.1} parent=55 // pred_check_branch
          %408 = sbr.rel (%p406) target = $region60
        $region59: #{tpu_custom_call.1} parent=55 // pred_region
          %p409 = scmp.lt.s32.totalorder %s29, 1
          %s410 = scalar_select %p409, %s29, 1
          %p411 = scmp.lt.s32.totalorder %s30, 0
          %s412 = scalar_select %p411, %s30, 0
          %s413 = sadd.s32 %s412, %s410
          %s414 = scalar_lea.vmem %s2, %s413
        $region60: #{tpu_custom_call.1} parent=55 // pred_fallthru
          _
        // Predicated region
        $region61: #{tpu_custom_call.1} parent=55 // pred_check
          %p415 = pneg %p154
        $region62: #{tpu_custom_call.1} parent=55 // pred_check_branch
          %417 = sbr.rel (%p415) target = $region64
        $region63: #{tpu_custom_call.1} parent=55 // pred_region
          %p418 = scmp.lt.s32.totalorder %s29, 1
          %s419 = scalar_select %p418, %s29, 1
          %p420 = scmp.lt.s32.totalorder %s30, 0
          %s421 = scalar_select %p420, %s30, 0
          %s422 = sadd.s32 %s421, %s419
          %s423 = scalar_lea.vmem %s3, %s422
        $region64: #{tpu_custom_call.1} parent=55 // pred_fallthru
          _
      $region56: #{tpu_custom_call.1} parent=5 // pred_fallthru
        _
    $region6: #{tpu_custom_call.1} parent=1 // loop_footer
      %s20 = sadd.s32 1, %s16
    $region7: #{tpu_custom_call.1} parent=1 // loop_footer_branch
      %15 = sbr.rel target = $region3
    $region8: #{tpu_custom_call.1} parent=1 // loop_exit
      _
    %424 = vsyncpa [#allocation5], 1
    %s425 = scalar_lea.sflag [#allocation5], 1
    %426 = vsyncpa %s425, 1
    %427 = vsyncpa [#allocation7], 1
    %s428 = scalar_lea.sflag [#allocation7], 1
    %429 = vsyncpa %s428, 1

</llo_original>
